<compile_context>
chip_gen: v6e
topology: v6e:2x2x1
jax: 0.10.0
libtpu: 0.0.40
codegen_flags: <defaults>
</compile_context>

<pallas_src>
import functools

import numpy as np
import jax
import jax.numpy as jnp
from jax.experimental import pallas as pl
from jax.experimental.pallas import tpu as pltpu


def _round_up(n, m):
    return ((n + m - 1) // m) * m


def _moe_gate_kernel(x_ref, w_ref, vals_ref, idx_ref, *, top_k):
    # x_ref:    [TR, dim]    activations (native dtype, dim on lanes)
    # w_ref:    [E, dim]     gate weight (cast to x dtype in wrapper, tiny)
    # vals_ref: [top_k, TR]  top-k softmax scores (x dtype), tokens on lanes
    # idx_ref:  [top_k, TR]  expert indices (int32), tokens on lanes
    x = x_ref[...]
    w = w_ref[...]

    # logits[E, TR] = W[E, dim] . X[TR, dim]  (contract hidden dim -> MXU,
    # f32 accumulation; experts land on sublanes, tokens on lanes).
    logits = jax.lax.dot_general(
        w, x,
        dimension_numbers=(((1,), (1,)), ((), ())),
        preferred_element_type=jnp.float32)                     # [E, TR]

    n_experts = logits.shape[0]

    # Softmax stats over the tiny expert (sublane) axis.
    m = jnp.max(logits, axis=0, keepdims=True)                  # [1, TR]
    sum_exp = jnp.sum(jnp.exp(logits - m), axis=0, keepdims=True)
    inv_sum = pl.reciprocal(sum_exp, approx=True)               # EUP slot

    eidx = jax.lax.broadcasted_iota(jnp.int32, logits.shape, 0)  # [E, TR]

    # k unrolled argmax passes on the raw logits (softmax is monotone).
    remaining = logits
    val_rows = []
    idx_rows = []
    for _ in range(top_k):                                      # static k
        m_j = jnp.max(remaining, axis=0, keepdims=True)         # [1, TR]
        is_max = remaining == m_j
        # first index achieving the max (torch/lax tie-breaking)
        i_j = jnp.min(jnp.where(is_max, eidx, n_experts),
                      axis=0, keepdims=True)                    # [1, TR] int32
        val_rows.append(jnp.exp(m_j - m) * inv_sum)             # normalized
        idx_rows.append(i_j)
        remaining = jnp.where(eidx == i_j, -jnp.inf, remaining)

    vals_ref[...] = jnp.concatenate(val_rows, axis=0).astype(vals_ref.dtype)
    idx_ref[...] = jnp.concatenate(idx_rows, axis=0)


def _pick_tiles(T, dim, itemsize, row_tile):
    """Token-tile size (multiple of 128, tokens sit on lanes of the outputs)."""
    t128 = _round_up(max(T, 1), 128)
    # VMEM budget for the double-buffered x blocks; conservative enough for
    # v5e's 16 MiB default scoped limit and v7x's 64 MiB physical VMEM.
    budget = 12 * 1024 * 1024
    cap = max(128, (budget // (2 * dim * itemsize)) // 128 * 128)
    tr = min(row_tile, cap, t128)
    n_tiles = -(-t128 // tr)
    if n_tiles == 1 and t128 >= 256:
        n_tiles = 2  # v7x: keep both TensorCores busy when tokens allow
    tr = _round_up(-(-t128 // n_tiles), 128)
    return tr, n_tiles * tr


def moe_gate(x, weight, top_k, *, row_tile=1024):
    """x: [..., dim]; weight: [n_experts, dim]. Returns (values, indices) of
    shape [T, top_k] with T = prod(leading dims), matching MoEGate.forward."""
    dim = x.shape[-1]
    n_experts = weight.shape[0]
    assert weight.shape[1] == dim
    assert top_k <= n_experts

    x2 = x.reshape(-1, dim)
    T = x2.shape[0]

    tr, t_pad = _pick_tiles(T, dim, x2.dtype.itemsize, row_tile)
    if t_pad != T:
        x2 = jnp.pad(x2, ((0, t_pad - T), (0, 0)))

    # PyTorch: cast_to(self.weight, dtype=x.dtype) — tiny, done once here.
    w = weight.astype(x.dtype)                                   # [E, dim]

    kernel = functools.partial(_moe_gate_kernel, top_k=top_k)

    vals_t, idx_t = pl.pallas_call(
        kernel,
        out_shape=(
            jax.ShapeDtypeStruct((top_k, t_pad), x.dtype),
            jax.ShapeDtypeStruct((top_k, t_pad), jnp.int32),
        ),
        grid=(t_pad // tr,),
        in_specs=[
            pl.BlockSpec((tr, dim), lambda i: (i, 0)),
            pl.BlockSpec((n_experts, dim), lambda i: (0, 0)),
        ],
        out_specs=(
            pl.BlockSpec((top_k, tr), lambda i: (0, i)),
            pl.BlockSpec((top_k, tr), lambda i: (0, i)),
        ),
        compiler_params=pltpu.CompilerParams(
            dimension_semantics=("parallel",)),
    )(x2, w)

    # Tiny transposes/slices on [top_k, T] in the wrapper (negligible).
    return vals_t[:, :T].T, idx_t[:, :T].T


# ---------------- pure-JAX reference (mirrors the PyTorch MoEGate) ----------
def _moe_gate_ref(x, weight, top_k):
    x2 = x.reshape(-1, x.shape[-1])
    logits = jnp.dot(x2, weight.astype(x2.dtype).T,
                     preferred_element_type=jnp.float32)
    scores = jax.nn.softmax(logits.astype(jnp.float32), axis=-1)
    vals, idx = jax.lax.top_k(scores, top_k)
    return vals.astype(x2.dtype), idx, scores.astype(x2.dtype)


if __name__ == "__main__":
    # Module config (MoEGate has one parameter: weight [n_experts, dim]).
    dim = 32
    num_routed_experts = 4
    num_activated_experts = 2
    B, N = 2, 8   # -> T = 16 tokens

    key = jax.random.PRNGKey(0)
    kx, kw = jax.random.split(key)
    x = jax.random.normal(kx, (B, N, dim), dtype=jnp.float32)
    weight = 0.1 * jax.random.normal(kw, (num_routed_experts, dim),
                                     dtype=jnp.float32)

    vals, idx = moe_gate(x, weight, num_activated_experts)
    vals = jax.block_until_ready(vals)
    idx = jax.block_until_ready(idx)

    ref_vals, ref_idx, ref_scores = _moe_gate_ref(x, weight,
                                                  num_activated_experts)

    T = B * N
    assert vals.shape == (T, num_activated_experts), vals.shape
    assert idx.shape == (T, num_activated_experts), idx.shape
    assert idx.dtype == jnp.int32

    tol = dict(rtol=5e-3, atol=5e-3)
    vals_np = np.asarray(vals)
    idx_np = np.asarray(idx)
    ref_vals_np = np.asarray(ref_vals)
    ref_scores_np = np.asarray(ref_scores)

    # 1) top-k values match the reference (both emitted in descending order).
    np.testing.assert_allclose(vals_np, ref_vals_np, **tol)
    # 2) indices are valid and consistent with the returned values.
    assert ((idx_np >= 0) & (idx_np < num_routed_experts)).all()
    assert all(len(set(row.tolist())) == num_activated_experts for row in idx_np)
    sel = np.take_along_axis(ref_scores_np, idx_np, axis=-1)
    np.testing.assert_allclose(sel, vals_np, **tol)
    # 3) the selected experts really are a top-k set (up to numerical tol).
    kth = ref_vals_np[:, -1]
    assert (sel.min(axis=-1) >= kth - 5e-3).all()

    print("KERNEL_OK")
</pallas_src>

<mosaic_0001>
module attributes {stable_mosaic.version = 11 : i64} {
  func.func @_moe_gate_kernel(%arg0: i32, %arg1: memref<128x32xf32, #tpu.memory_space<vmem>>, %arg2: memref<4x32xf32, #tpu.memory_space<vmem>>, %arg3: memref<2x128xf32, #tpu.memory_space<vmem>>, %arg4: memref<2x128xi32, #tpu.memory_space<vmem>>) attributes {dimension_semantics = [#tpu.dimension_semantics<parallel>], iteration_bounds = array<i64: 1>, scalar_prefetch = 0 : i64, scratch_operands = 0 : i64, tpu.core_type = #tpu.core_type<tc>, window_params = [{transform_indices = @transform_0, window_bounds = array<i64: 128, 32>}, {pipeline_mode = #tpu.pipeline_mode<synchronous>, transform_indices = @transform_1, window_bounds = array<i64: 4, 32>}, {transform_indices = @transform_2, window_bounds = array<i64: 2, 128>}, {transform_indices = @transform_3, window_bounds = array<i64: 2, 128>}]} {
    %c0 = arith.constant 0 : index
    %c0_0 = arith.constant 0 : index
    %0 = vector.load %arg1[%c0, %c0_0] : memref<128x32xf32, #tpu.memory_space<vmem>>, vector<128x32xf32>
    %c0_1 = arith.constant 0 : index
    %c0_2 = arith.constant 0 : index
    %1 = vector.load %arg2[%c0_1, %c0_2] : memref<4x32xf32, #tpu.memory_space<vmem>>, vector<4x32xf32>
    %cst = arith.constant dense<0.000000e+00> : vector<4x128xf32>
    %2 = tpu.matmul %1, %0, %cst {dimension_numbers = #tpu.dot_dimension_numbers<[1], [1], [0], [0], [0, 0, 1, 0], [], []>} : vector<4x32xf32>, vector<128x32xf32>, vector<4x128xf32> -> vector<4x128xf32>
    %cst_3 = arith.constant dense<0xFF800000> : vector<128xf32>
    %3 = vector.multi_reduction <maximumf>, %2, %cst_3 [0] : vector<4x128xf32> to vector<128xf32>
    %4 = vector.shape_cast %3 : vector<128xf32> to vector<1x128xf32>
    %5 = vector.broadcast %4 : vector<1x128xf32> to vector<4x128xf32>
    %6 = arith.subf %2, %5 : vector<4x128xf32>
    %7 = math.exp %6 : vector<4x128xf32>
    %cst_4 = arith.constant dense<0.000000e+00> : vector<128xf32>
    %8 = vector.multi_reduction <add>, %7, %cst_4 [0] : vector<4x128xf32> to vector<128xf32>
    %9 = vector.shape_cast %8 : vector<128xf32> to vector<1x128xf32>
    %10 = tpu.reciprocal %9 {approx = true} : vector<1x128xf32> -> vector<1x128xf32>
    %11 = tpu.iota {dimensions = array<i32: 0>} : vector<4x128xi32>
    %cst_5 = arith.constant dense<0xFF800000> : vector<128xf32>
    %12 = vector.multi_reduction <maximumf>, %2, %cst_5 [0] : vector<4x128xf32> to vector<128xf32>
    %13 = vector.shape_cast %12 : vector<128xf32> to vector<1x128xf32>
    %14 = vector.broadcast %13 : vector<1x128xf32> to vector<4x128xf32>
    %15 = arith.cmpf oeq, %2, %14 : vector<4x128xf32>
    %c4_i32 = arith.constant 4 : i32
    %16 = vector.broadcast %c4_i32 : i32 to vector<4x128xi32>
    %17 = arith.select %15, %11, %16 : vector<4x128xi1>, vector<4x128xi32>
    %cst_6 = arith.constant dense<2147483647> : vector<128xi32>
    %18 = vector.multi_reduction <minsi>, %17, %cst_6 [0] : vector<4x128xi32> to vector<128xi32>
    %19 = vector.shape_cast %18 : vector<128xi32> to vector<1x128xi32>
    %20 = arith.subf %13, %4 : vector<1x128xf32>
    %21 = math.exp %20 : vector<1x128xf32>
    %22 = arith.mulf %21, %10 : vector<1x128xf32>
    %23 = vector.broadcast %19 : vector<1x128xi32> to vector<4x128xi32>
    %24 = arith.cmpi eq, %11, %23 : vector<4x128xi32>
    %cst_7 = arith.constant 0xFF800000 : f32
    %25 = vector.broadcast %cst_7 : f32 to vector<4x128xf32>
    %26 = arith.select %24, %25, %2 : vector<4x128xi1>, vector<4x128xf32>
    %cst_8 = arith.constant dense<0xFF800000> : vector<128xf32>
    %27 = vector.multi_reduction <maximumf>, %26, %cst_8 [0] : vector<4x128xf32> to vector<128xf32>
    %28 = vector.shape_cast %27 : vector<128xf32> to vector<1x128xf32>
    %29 = vector.broadcast %28 : vector<1x128xf32> to vector<4x128xf32>
    %30 = arith.cmpf oeq, %26, %29 : vector<4x128xf32>
    %c4_i32_9 = arith.constant 4 : i32
    %31 = vector.broadcast %c4_i32_9 : i32 to vector<4x128xi32>
    %32 = arith.select %30, %11, %31 : vector<4x128xi1>, vector<4x128xi32>
    %cst_10 = arith.constant dense<2147483647> : vector<128xi32>
    %33 = vector.multi_reduction <minsi>, %32, %cst_10 [0] : vector<4x128xi32> to vector<128xi32>
    %34 = vector.shape_cast %33 : vector<128xi32> to vector<1x128xi32>
    %35 = arith.subf %28, %4 : vector<1x128xf32>
    %36 = math.exp %35 : vector<1x128xf32>
    %37 = arith.mulf %36, %10 : vector<1x128xf32>
    %38 = tpu.concatenate %22, %37 in 0 : vector<1x128xf32>, vector<1x128xf32> -> vector<2x128xf32>
    %c0_11 = arith.constant 0 : index
    %c0_12 = arith.constant 0 : index
    %39 = vector.load %arg3[%c0_11, %c0_12] : memref<2x128xf32, #tpu.memory_space<vmem>>, vector<2x128xf32>
    tpu.vector_store %arg3[%c0_11, %c0_12], %38 {strides = array<i32>} : memref<2x128xf32, #tpu.memory_space<vmem>>, vector<2x128xf32>,
    %40 = tpu.concatenate %19, %34 in 0 : vector<1x128xi32>, vector<1x128xi32> -> vector<2x128xi32>
    %c0_13 = arith.constant 0 : index
    %c0_14 = arith.constant 0 : index
    %41 = vector.load %arg4[%c0_13, %c0_14] : memref<2x128xi32, #tpu.memory_space<vmem>>, vector<2x128xi32>
    tpu.vector_store %arg4[%c0_13, %c0_14], %40 {strides = array<i32>} : memref<2x128xi32, #tpu.memory_space<vmem>>, vector<2x128xi32>,
    return
  }
  func.func @transform_0(%arg0: i32) -> (i32, i32) {
    %c0_i32 = arith.constant 0 : i32
    %c0_i32_0 = arith.constant 0 : i32
    return %arg0, %c0_i32 : i32, i32
  }
  func.func @transform_1(%arg0: i32) -> (i32, i32) {
    %c0_i32 = arith.constant 0 : i32
    %c0_i32_0 = arith.constant 0 : i32
    %c0_i32_1 = arith.constant 0 : i32
    return %c0_i32, %c0_i32_0 : i32, i32
  }
  func.func @transform_2(%arg0: i32) -> (i32, i32) {
    %c0_i32 = arith.constant 0 : i32
    %c0_i32_0 = arith.constant 0 : i32
    return %c0_i32, %arg0 : i32, i32
  }
  func.func @transform_3(%arg0: i32) -> (i32, i32) {
    %c0_i32 = arith.constant 0 : i32
    %c0_i32_0 = arith.constant 0 : i32
    return %c0_i32, %arg0 : i32, i32
  }
}

</mosaic_0001>

<llo_original>
// kernel: tpu_custom_call.1
$region0: #{tpu_custom_call.1}
  #allocation0 [shape = 'u32[]', space=smem, size = 0x4, offset = 0x4, fixed_abs, tag = 'smem constant byte address 0x4 - core index']
  #allocation1 [shape = 'u32[144,128]{1,0:T(1,128)}', space=vmem, size = 0x12000, scoped, tag = 'internal scratch']
  %s0 = inlined_call_operand.vmem [shape: f32[128,32], index: 0, kind: input, shape index: {}]
  %s1 = inlined_call_operand.vmem [shape: f32[4,32], index: 1, kind: input, shape index: {}]
  %s2 = inlined_call_operand.hbm [shape: f32[2,128], index: 2, kind: output, shape index: {0}]
  %s3 = inlined_call_operand.hbm [shape: s32[2,128], index: 3, kind: output, shape index: {1}]
  %4 = xla_tuple %s2, %s3
  %s5 = sld [smem:[#allocation0]]
  $region26: #{tpu_custom_call.1} parent=0
    _
  %s7 = ssub.s32 1, %s5
  %s8 = scalar_select 0, %s7, %s5
  $region1: #{tpu_custom_call.1} parent=0
    #allocation2 [shape = 'u8[1024]{0}', space=vmem, size = 0x400, scoped, tag = 'output window, operand 0, single buffered']
    #allocation3 [shape = 's32[1]{0}', space=sflag, size = 0x4, scoped, tag = 'scoped memory for tpu_custom_call.1']
    #allocation4 [shape = 'u8[1024]{0}', space=vmem, size = 0x400, scoped, tag = 'output window, operand 1, single buffered']
    #allocation5 [shape = 's32[1]{0}', space=sflag, size = 0x4, scoped, tag = 'scoped memory for tpu_custom_call.1']
    %9 = vsyncpa [#allocation3], 0
    %10 = vsyncpa [#allocation5], 0
    // Predicated region
    $region2: #{tpu_custom_call.1} parent=1 // pred_check
      _
    $region3: #{tpu_custom_call.1} parent=1 // pred_check_branch
      %12 = sbr.rel (0) target = $region5
    $region4: #{tpu_custom_call.1} parent=1 // pred_region
      _
    $region5: #{tpu_custom_call.1} parent=1 // pred_fallthru
      _
    // Predicated region
    $region6: #{tpu_custom_call.1} parent=1 // pred_check
      _
    $region7: #{tpu_custom_call.1} parent=1 // pred_check_branch
      %14 = sbr.rel (0) target = $region9
    $region8: #{tpu_custom_call.1} parent=1 // pred_region
      _
    $region9: #{tpu_custom_call.1} parent=1 // pred_fallthru
      _
    %v15 = vld [vmem:[%s0] sm:$0xff]
    %v16 = vld [vmem:[%s0 + $0x8] sm:$0xff]
    %v17 = vld [vmem:[%s0 + $0x10] sm:$0xff]
    %v18 = vld [vmem:[%s0 + $0x18] sm:$0xff]
    %v19 = vld [vmem:[%s0 + $0x20] sm:$0xff]
    %v20 = vld [vmem:[%s0 + $0x28] sm:$0xff]
    %v21 = vld [vmem:[%s0 + $0x30] sm:$0xff]
    %v22 = vld [vmem:[%s0 + $0x38] sm:$0xff]
    %v23 = vld [vmem:[%s0 + $0x40] sm:$0xff]
    %v24 = vld [vmem:[%s0 + $0x48] sm:$0xff]
    %v25 = vld [vmem:[%s0 + $0x50] sm:$0xff]
    %v26 = vld [vmem:[%s0 + $0x58] sm:$0xff]
    %v27 = vld [vmem:[%s0 + $0x60] sm:$0xff]
    %v28 = vld [vmem:[%s0 + $0x68] sm:$0xff]
    %v29 = vld [vmem:[%s0 + $0x70] sm:$0xff]
    %v30 = vld [vmem:[%s0 + $0x78] sm:$0xff]
    %v31 = vld [vmem:[%s1] sm:$0xf]
    %vm32 = vcmask 261120
    %v34 = vsel %vm32, %v31, 0
    %v37 = vsel %vm32, %v15, 0
    %v40 = vsel %vm32, %v16, 0
    %v43 = vsel %vm32, %v17, 0
    %v46 = vsel %vm32, %v18, 0
    %v49 = vsel %vm32, %v19, 0
    %v52 = vsel %vm32, %v20, 0
    %v55 = vsel %vm32, %v21, 0
    %v58 = vsel %vm32, %v22, 0
    %v61 = vsel %vm32, %v23, 0
    %v64 = vsel %vm32, %v24, 0
    %v67 = vsel %vm32, %v25, 0
    %v70 = vsel %vm32, %v26, 0
    %v73 = vsel %vm32, %v27, 0
    %v76 = vsel %vm32, %v28, 0
    %v79 = vsel %vm32, %v29, 0
    %v82 = vsel %vm32, %v30, 0
    %84 = vmatprep.subr.mxu0 0.0
    %85 = vmatpush1.xpose.msra.mxu0 %v82
    %86 = vmatprep.subr.mxu0 0.0
    %87 = vmatpush1.xpose.msra.mxu0 %v79
    %88 = vmatprep.subr.mxu0 0.0
    %89 = vmatpush1.xpose.msra.mxu0 %v76
    %90 = vmatprep.subr.mxu0 0.0
    %91 = vmatpush1.xpose.msra.mxu0 %v73
    %92 = vmatprep.subr.mxu0 0.0
    %93 = vmatpush1.xpose.msra.mxu0 %v70
    %94 = vmatprep.subr.mxu0 0.0
    %95 = vmatpush1.xpose.msra.mxu0 %v67
    %96 = vmatprep.subr.mxu0 0.0
    %97 = vmatpush1.xpose.msra.mxu0 %v64
    %98 = vmatprep.subr.mxu0 0.0
    %99 = vmatpush1.xpose.msra.mxu0 %v61
    %100 = vmatprep.subr.mxu0 0.0
    %101 = vmatpush1.xpose.msra.mxu0 %v58
    %102 = vmatprep.subr.mxu0 0.0
    %103 = vmatpush1.xpose.msra.mxu0 %v55
    %104 = vmatprep.subr.mxu0 0.0
    %105 = vmatpush1.xpose.msra.mxu0 %v52
    %106 = vmatprep.subr.mxu0 0.0
    %107 = vmatpush1.xpose.msra.mxu0 %v49
    %108 = vmatprep.subr.mxu0 0.0
    %109 = vmatpush1.xpose.msra.mxu0 %v46
    %110 = vmatprep.subr.mxu0 0.0
    %111 = vmatpush1.xpose.msra.mxu0 %v43
    %112 = vmatprep.subr.mxu0 0.0
    %113 = vmatpush1.xpose.msra.mxu0 %v40
    %114 = vmatprep.subr.mxu0 0.0
    %115 = vmatpush1.xpose.msra.mxu0 %v37
    %116 = vmatprep.subr.mxu0 0.0
    %117 = vmatpush2.xpose.msra.mxu0 0.0
    %118 = vmatprep.subr.mxu0 0.0
    %119 = vmatpush2.xpose.msra.mxu0 0.0
    %120 = vmatprep.subr.mxu0 0.0
    %121 = vmatpush2.xpose.msra.mxu0 0.0
    %122 = vmatprep.subr.mxu0 0.0
    %123 = vmatpush2.xpose.msra.mxu0 0.0
    %124 = vmatprep.subr.mxu0 0.0
    %125 = vmatpush2.xpose.msra.mxu0 0.0
    %126 = vmatprep.subr.mxu0 0.0
    %127 = vmatpush2.xpose.msra.mxu0 0.0
    %128 = vmatprep.subr.mxu0 0.0
    %129 = vmatpush2.xpose.msra.mxu0 0.0
    %130 = vmatprep.subr.mxu0 0.0
    %131 = vmatpush2.xpose.msra.mxu0 0.0
    %132 = vmatprep.subr.mxu0 0.0
    %133 = vmatpush2.xpose.msra.mxu0 0.0
    %134 = vmatprep.subr.mxu0 0.0
    %135 = vmatpush2.xpose.msra.mxu0 0.0
    %136 = vmatprep.subr.mxu0 0.0
    %137 = vmatpush2.xpose.msra.mxu0 0.0
    %138 = vmatprep.subr.mxu0 0.0
    %139 = vmatpush2.xpose.msra.mxu0 0.0
    %140 = vmatprep.subr.mxu0 0.0
    %141 = vmatpush2.xpose.msra.mxu0 0.0
    %142 = vmatprep.subr.mxu0 0.0
    %143 = vmatpush2.xpose.msra.mxu0 0.0
    %144 = vmatprep.subr.mxu0 0.0
    %145 = vmatpush2.xpose.msra.mxu0 0.0
    %146 = vmatprep.subr.mxu0 0.0
    %147 = vmatpush2.xpose.msra.mxu0 0.0
    %148 = vmatprep.mubr.f32.mxu0 0.0
    %149 = vmatmul.mubr.f32.gmra.mxu0 %v34
    %v150 = vpop.f32.mrf.mxu0
    %v151 = vadd.f32 0.0, %v150
    %v152 = vpop.f32.mrf.mxu0
    %153 = vdwg.mxu0
    %vm154 = vcmask 1043456
    %v155 = vsel %vm154, %v151, -inf
    %v156 = vrot.slane %v155, 4
    %v157 = vmax.f32 %v155, %v156
    %v158 = vrot.slane %v157, 2
    %v159 = vmax.f32 %v157, %v158
    %v160 = vrot.slane %v159, 1
    %v161 = vmax.f32 %v159, %v160
    %v162 = vsub.f32 %v151, %v161
    %v163 = vmul.f32 %v162, 1.442695
    %v164 = vpow.pop %v163
    %v165 = vsel %vm154, %v164, 0.0
    %v166 = vrot.slane %v165, 4
    %v167 = vadd.f32 %v165, %v166
    %v168 = vrot.slane %v167, 2
    %v169 = vadd.f32 %v167, %v168
    %v170 = vrot.slane %v169, 1
    %v171 = vadd.f32 %v169, %v170
    %v172 = vrcp.pop %v171
    %v173 = vlaneseq
    %v174 = vshrl.u32 %v173, 7
    %vm175 = vcmp.eq.f32.partialorder %v151, %v161
    %v176 = vsel %vm175, %v174, 4
    %v177 = vsel %vm154, %v176, 2147483647
    %v178 = vrot.slane %v177, 4
    %vm179 = vcmp.lt.s32.totalorder %v177, %v178
    %v180 = vsel %vm179, %v177, %v178
    %v181 = vrot.slane %v180, 2
    %vm182 = vcmp.lt.s32.totalorder %v180, %v181
    %v183 = vsel %vm182, %v180, %v181
    %v184 = vrot.slane %v183, 1
    %vm185 = vcmp.lt.s32.totalorder %v183, %v184
    %v186 = vsel %vm185, %v183, %v184
    %v187 = vsub.f32 %v161, %v161
    %v188 = vmul.f32 %v187, 1.442695
    %v189 = vpow.pop %v188
    %v190 = vmul.f32 %v189, %v172
    %vm191 = vcmp.eq.s32.totalorder %v174, %v186
    %v192 = vsel %vm191, -inf, %v151
    %v193 = vsel %vm154, %v192, -inf
    %v194 = vrot.slane %v193, 4
    %v195 = vmax.f32 %v193, %v194
    %v196 = vrot.slane %v195, 2
    %v197 = vmax.f32 %v195, %v196
    %v198 = vrot.slane %v197, 1
    %v199 = vmax.f32 %v197, %v198
    %vm200 = vcmp.eq.f32.partialorder %v192, %v199
    %v201 = vsel %vm200, %v174, 4
    %v202 = vsel %vm154, %v201, 2147483647
    %v203 = vrot.slane %v202, 4
    %vm204 = vcmp.lt.s32.totalorder %v202, %v203
    %v205 = vsel %vm204, %v202, %v203
    %v206 = vrot.slane %v205, 2
    %vm207 = vcmp.lt.s32.totalorder %v205, %v206
    %v208 = vsel %vm207, %v205, %v206
    %v209 = vrot.slane %v208, 1
    %vm210 = vcmp.lt.s32.totalorder %v208, %v209
    %v211 = vsel %vm210, %v208, %v209
    %v212 = vsub.f32 %v199, %v161
    %v213 = vmul.f32 %v212, 1.442695
    %v214 = vpow.pop %v213
    %v215 = vmul.f32 %v214, %v172
    %vm216 = vcmask 1040384
    %v217 = vsel %vm216, %v190, %v215
    %218 = vst [vmem:[#allocation2] sm:$0x3] %v217
    %v219 = vsel %vm216, %v186, %v211
    %220 = vst [vmem:[#allocation4] sm:$0x3] %v219
    // Predicated region
    $region10: #{tpu_custom_call.1} parent=1 // pred_check
      _
    $region11: #{tpu_custom_call.1} parent=1 // pred_check_branch
      %222 = sbr.rel (0) target = $region13
    $region12: #{tpu_custom_call.1} parent=1 // pred_region
      %s224 = ssub.s32 32, 32
      %225 = vsyncadd [#allocation3], %s224
      %s227 = sshll.u32 [#allocation2], 4
      %s228 = int_to_ptr.vmem [resolvable:$true] %s227
      %230 = dma.vmem_to_hbm [thread:$0]  %s228, 32, %s2, [#allocation3]
    $region13: #{tpu_custom_call.1} parent=1 // pred_fallthru
      _
    // Predicated region
    $region14: #{tpu_custom_call.1} parent=1 // pred_check
      _
    $region15: #{tpu_custom_call.1} parent=1 // pred_check_branch
      %232 = sbr.rel (0) target = $region17
    $region16: #{tpu_custom_call.1} parent=1 // pred_region
      %s234 = ssub.s32 32, 32
      %235 = vsyncadd [#allocation5], %s234
      %s237 = sshll.u32 [#allocation4], 4
      %s238 = int_to_ptr.vmem [resolvable:$true] %s237
      %240 = dma.vmem_to_hbm [thread:$0]  %s238, 32, %s3, [#allocation5]
    $region17: #{tpu_custom_call.1} parent=1 // pred_fallthru
      _
    // Predicated region
    $region18: #{tpu_custom_call.1} parent=1 // pred_check
      _
    $region19: #{tpu_custom_call.1} parent=1 // pred_check_branch
      %242 = sbr.rel (0) target = $region21
    $region20: #{tpu_custom_call.1} parent=1 // pred_region
      %243 = dma.done [#allocation3], 32
    $region21: #{tpu_custom_call.1} parent=1 // pred_fallthru
      _
    // Predicated region
    $region22: #{tpu_custom_call.1} parent=1 // pred_check
      _
    $region23: #{tpu_custom_call.1} parent=1 // pred_check_branch
      %245 = sbr.rel (0) target = $region25
    $region24: #{tpu_custom_call.1} parent=1 // pred_region
      %246 = dma.done [#allocation5], 32
    $region25: #{tpu_custom_call.1} parent=1 // pred_fallthru
      _
    %247 = vsyncpa [#allocation3], 1
    %248 = vsyncpa [#allocation5], 1

</llo_original>
